<compile_context>
chip_gen: v6e
topology: v6e:2x2x1
jax: 0.10.0
libtpu: 0.0.40
codegen_flags: <defaults>
</compile_context>

<pallas_src>
import functools

import jax
import jax.numpy as jnp
from jax.experimental import pallas as pl
from jax.experimental.pallas import tpu as pltpu


def _ganloss_kernel(prob_ref, tgt_ref, rwd_ref, out_ref):
    """Accumulate sum_r reward[r] * prob[r, target[r]] into out_ref[0, :]."""
    i = pl.program_id(1)  # inner (reduction) grid axis

    @pl.when(i == 0)
    def _():
        out_ref[...] = jnp.zeros_like(out_ref)

    tm, d = prob_ref.shape
    # one-hot gather via lane-iota == target (target broadcast over lanes)
    col = jax.lax.broadcasted_iota(jnp.int32, (tm, d), 1)
    picked = jnp.where(col == tgt_ref[...],
                       prob_ref[...].astype(jnp.float32), 0.0)      # (tm, d)
    weighted = picked * rwd_ref[...].astype(jnp.float32)            # (tm, d)
    # Sublane partial reduce into the resident accumulator (VPU adds + one
    # in-vreg fold); the final cross-lane reduce + negate happen in the
    # JAX wrapper.
    out_ref[0:1, :] += jnp.sum(weighted, axis=0, keepdims=True)     # (1, d)


def _choose_row_tile(m, d, itemsize, target_bytes=2 << 20, max_rows=4096):
    """Rows per grid step: ~target_bytes of (lane-padded) prob per step."""
    d_pad = max(128, -(-d // 128) * 128)          # lane padding in VMEM/HBM
    bytes_per_row = d_pad * itemsize
    tm = target_bytes // bytes_per_row
    tm = max(8, (tm // 8) * 8)
    tm = min(tm, max_rows)                        # bounds (tm,1) side-buffers too
    tm = min(tm, max(8, -(-m // 8) * 8))          # never larger than (padded) M
    return int(tm)


@functools.partial(jax.jit, static_argnames=("tm", "num_cores"))
def gan_loss(prob, target, reward, *, tm=None, num_cores=2):
    """loss = -sum_i reward[i] * prob[i, target[i]]   (i over rows of prob)."""
    m, d = prob.shape
    assert target.shape == reward.shape
    assert target.shape[0] * target.shape[1] == m

    tgt = target.reshape(m, 1).astype(jnp.int32)
    rwd = reward.reshape(m, 1)
    # prob is NOT upcast here: it is the dominant HBM stream; keep native dtype.

    if tm is None:
        tm = _choose_row_tile(m, d, prob.dtype.itemsize)
    else:
        tm = max(8, (int(tm) // 8) * 8)

    p = int(num_cores)                  # leading "parallel" axis (v7x: 2 TCs)
    steps = -(-m // (p * tm))           # inner reduction steps per core
    m_pad = steps * p * tm
    if m_pad != m:
        # zero-padded rows contribute exactly 0 (reward = 0, prob = 0)
        pad = m_pad - m
        prob = jnp.pad(prob, ((0, pad), (0, 0)))
        tgt = jnp.pad(tgt, ((0, pad), (0, 0)))
        rwd = jnp.pad(rwd, ((0, pad), (0, 0)))

    partial = pl.pallas_call(
        _ganloss_kernel,
        out_shape=jax.ShapeDtypeStruct((p * 8, d), jnp.float32),
        grid_spec=pltpu.PrefetchScalarGridSpec(
            num_scalar_prefetch=0,
            grid=(p, steps),
            in_specs=[
                pl.BlockSpec((tm, d), lambda c, i: (c * steps + i, 0)),  # prob
                pl.BlockSpec((tm, 1), lambda c, i: (c * steps + i, 0)),  # target
                pl.BlockSpec((tm, 1), lambda c, i: (c * steps + i, 0)),  # reward
            ],
            out_specs=pl.BlockSpec((8, d), lambda c, i: (c, 0)),  # per-core partial
        ),
        compiler_params=pltpu.CompilerParams(
            dimension_semantics=("parallel", "arbitrary"),
            vmem_limit_bytes=32 * 1024 * 1024,
        ),
    )(prob, tgt, rwd)

    # tiny final reduction (p*8*d elements) + negate in plain JAX
    return -jnp.sum(partial)


if __name__ == "__main__":
    key = jax.random.PRNGKey(0)
    N, C, D = 2, 8, 32          # small synthetic shapes; M = N*C = 16
    k1, k2, k3 = jax.random.split(key, 3)

    prob = jax.nn.softmax(jax.random.normal(k1, (N * C, D), dtype=jnp.float32), axis=-1)
    target = jax.random.randint(k2, (N, C), 0, D, dtype=jnp.int32)
    reward = jax.random.uniform(k3, (N, C), dtype=jnp.float32)

    loss = gan_loss(prob, target, reward)
    jax.block_until_ready(loss)

    # plain-JAX reference check
    one_hot = jax.nn.one_hot(target.reshape(-1), D, dtype=jnp.float32)
    ref = -jnp.sum(one_hot * reward.reshape(-1, 1) * prob)
    assert jnp.allclose(loss, ref, rtol=1e-5, atol=1e-5), (loss, ref)

    print("KERNEL_OK")
</pallas_src>

<mosaic_0001>
module attributes {stable_mosaic.version = 11 : i64} {
  func.func @_ganloss_kernel(%arg0: i32, %arg1: i32, %arg2: memref<16x32xf32, #tpu.memory_space<vmem>>, %arg3: memref<16x1xi32, #tpu.memory_space<vmem>>, %arg4: memref<16x1xf32, #tpu.memory_space<vmem>>, %arg5: memref<8x32xf32, #tpu.memory_space<vmem>>) attributes {dimension_semantics = [#tpu.dimension_semantics<parallel>, #tpu.dimension_semantics<arbitrary>], iteration_bounds = array<i64: 2, 1>, scalar_prefetch = 0 : i64, scratch_operands = 0 : i64, tpu.core_type = #tpu.core_type<tc>, window_params = [{transform_indices = @transform_0, window_bounds = array<i64: 16, 32>}, {transform_indices = @transform_1, window_bounds = array<i64: 16, 1>}, {transform_indices = @transform_2, window_bounds = array<i64: 16, 1>}, {transform_indices = @transform_3, window_bounds = array<i64: 8, 32>}]} {
    %c0_i32 = arith.constant 0 : i32
    %0 = arith.cmpi eq, %arg1, %c0_i32 : i32
    %1 = arith.extui %0 : i1 to i32
    %c0_i32_0 = arith.constant 0 : i32
    %2 = arith.cmpi ne, %1, %c0_i32_0 : i32
    scf.if %2 {
      %cst_11 = arith.constant 0.000000e+00 : f32
      %18 = vector.broadcast %cst_11 : f32 to vector<8x32xf32>
      %c0_12 = arith.constant 0 : index
      %c0_13 = arith.constant 0 : index
      %19 = vector.load %arg5[%c0_12, %c0_13] : memref<8x32xf32, #tpu.memory_space<vmem>>, vector<8x32xf32>
      tpu.vector_store %arg5[%c0_12, %c0_13], %18 {strides = array<i32>} : memref<8x32xf32, #tpu.memory_space<vmem>>, vector<8x32xf32>,
    } else {
    }
    %3 = tpu.iota {dimensions = array<i32: 1>} : vector<16x32xi32>
    %c0 = arith.constant 0 : index
    %c0_1 = arith.constant 0 : index
    %4 = vector.load %arg3[%c0, %c0_1] : memref<16x1xi32, #tpu.memory_space<vmem>>, vector<16x1xi32>
    %5 = vector.broadcast %4 : vector<16x1xi32> to vector<16x32xi32>
    %6 = arith.cmpi eq, %3, %5 : vector<16x32xi32>
    %c0_2 = arith.constant 0 : index
    %c0_3 = arith.constant 0 : index
    %7 = vector.load %arg2[%c0_2, %c0_3] : memref<16x32xf32, #tpu.memory_space<vmem>>, vector<16x32xf32>
    %cst = arith.constant 0.000000e+00 : f32
    %8 = vector.broadcast %cst : f32 to vector<16x32xf32>
    %9 = arith.select %6, %7, %8 : vector<16x32xi1>, vector<16x32xf32>
    %c0_4 = arith.constant 0 : index
    %c0_5 = arith.constant 0 : index
    %10 = vector.load %arg4[%c0_4, %c0_5] : memref<16x1xf32, #tpu.memory_space<vmem>>, vector<16x1xf32>
    %11 = vector.broadcast %10 : vector<16x1xf32> to vector<16x32xf32>
    %12 = arith.mulf %9, %11 : vector<16x32xf32>
    %c0_6 = arith.constant 0 : index
    %c0_7 = arith.constant 0 : index
    %13 = vector.load %arg5[%c0_6, %c0_7] : memref<8x32xf32, #tpu.memory_space<vmem>>, vector<1x32xf32>
    %cst_8 = arith.constant dense<0.000000e+00> : vector<32xf32>
    %14 = vector.multi_reduction <add>, %12, %cst_8 [0] : vector<16x32xf32> to vector<32xf32>
    %15 = vector.shape_cast %14 : vector<32xf32> to vector<1x32xf32>
    %16 = arith.addf %13, %15 : vector<1x32xf32>
    %c0_9 = arith.constant 0 : index
    %c0_10 = arith.constant 0 : index
    %17 = vector.load %arg5[%c0_9, %c0_10] : memref<8x32xf32, #tpu.memory_space<vmem>>, vector<1x32xf32>
    tpu.vector_store %arg5[%c0_9, %c0_10], %16 {strides = array<i32>} : memref<8x32xf32, #tpu.memory_space<vmem>>, vector<1x32xf32>,
    return
  }
  func.func @transform_0(%arg0: i32, %arg1: i32) -> (i32, i32) {
    %c1_i32 = arith.constant 1 : i32
    %0 = arith.muli %arg0, %c1_i32 : i32
    %1 = arith.addi %0, %arg1 : i32
    %c0_i32 = arith.constant 0 : i32
    %c0_i32_0 = arith.constant 0 : i32
    return %1, %c0_i32 : i32, i32
  }
  func.func @transform_1(%arg0: i32, %arg1: i32) -> (i32, i32) {
    %c1_i32 = arith.constant 1 : i32
    %0 = arith.muli %arg0, %c1_i32 : i32
    %1 = arith.addi %0, %arg1 : i32
    %c0_i32 = arith.constant 0 : i32
    %c0_i32_0 = arith.constant 0 : i32
    return %1, %c0_i32 : i32, i32
  }
  func.func @transform_2(%arg0: i32, %arg1: i32) -> (i32, i32) {
    %c1_i32 = arith.constant 1 : i32
    %0 = arith.muli %arg0, %c1_i32 : i32
    %1 = arith.addi %0, %arg1 : i32
    %c0_i32 = arith.constant 0 : i32
    %c0_i32_0 = arith.constant 0 : i32
    return %1, %c0_i32 : i32, i32
  }
  func.func @transform_3(%arg0: i32, %arg1: i32) -> (i32, i32) {
    %c0_i32 = arith.constant 0 : i32
    %c0_i32_0 = arith.constant 0 : i32
    return %arg0, %c0_i32 : i32, i32
  }
}

</mosaic_0001>

<llo_original>
// kernel: gan_loss.1
$region0: #{gan_loss.1}
  #allocation0 [shape = 'u32[]', space=smem, size = 0x4, offset = 0x4, fixed_abs, tag = 'smem constant byte address 0x4 - core index']
  #allocation1 [shape = 'u32[144,128]{1,0:T(1,128)}', space=vmem, size = 0x12000, scoped, tag = 'internal scratch']
  %s0 = inlined_call_operand.vmem [shape: f32[32,32], index: 0, kind: input, shape index: {}]
  %s1 = inlined_call_operand.vmem [shape: s32[32,1], index: 1, kind: input, shape index: {}]
  %s2 = inlined_call_operand.vmem [shape: f32[32,1], index: 2, kind: input, shape index: {}]
  %s3 = inlined_call_operand.vmem [shape: f32[16,32], index: 3, kind: output, shape index: {}]
  %s4 = sld [smem:[#allocation0]]
  $region49: #{gan_loss.1} parent=0
    _
  %s6 = ssub.s32 1, %s4
  %s7 = scalar_select 0, %s6, %s4
  loop: start=0, step=1, limit=4
  $region2: #{gan_loss.1} parent=0 // loop_pre_header
    _
  $region3: #{gan_loss.1} parent=0 // loop_header
    %s9 = sphi 0, %s13
    %p10 = scmp.ge.s32.totalorder %s9, 4
    %s16 = sphi 0, %s28
    %s17 = sphi 0, %s24
    %s18 = sphi 0, %s16
    %s19 = sphi 0, %s17
    %s20 = sphi 0, %s18
    %s21 = sphi 0, %s19
    %s33 = sphi 0, %s35
    %s36 = sphi 0, %s33
    %s37 = sphi 0, %s36
    %s53 = sphi 0, %s37
    %s61 = sphi 0, %s63
    %s64 = sphi 0, %s61
    %s65 = sphi 0, %s64
    %s81 = sphi 0, %s65
    %s89 = sphi 0, %s91
    %s92 = sphi 0, %s89
    %s93 = sphi 0, %s92
    %s109 = sphi 0, %s93
    %s115 = sphi 0, %s117
    %s118 = sphi 0, %s115
    %s119 = sphi 0, %s118
    %s135 = sphi 0, %s119
  $region4: #{gan_loss.1} parent=0 // loop_header_branch
    %12 = sbr.rel (%p10) target = $region8
  $region5: #{gan_loss.1} parent=0 // loop_body
    %s14 = ssub.s32 %s9, 1
    %s15 = ssub.s32 %s9, 2
    %s22 = sadd.s32 1, %s17
    %p23 = scmp.ge.s32.totalorder %s22, 1
    %s24 = scalar_select %p23, 0, %s22
    %s25 = sadd.s32 1, %s16
    %s26 = scalar_select %p23, %s25, %s16
    %p27 = scmp.ge.s32.totalorder %s26, 2
    %s28 = scalar_select %p27, 0, %s26
    %s29 = sadd.s32 %s16, %s17
    %s30 = sadd.s32 %s28, %s24
    %s31 = ssub.s32 %s29, %s30
    %p32 = scmp.eq.s32.totalorder %s31, 0
    %s34 = sadd.s32 %s33, 1
    %s35 = scalar_select %p32, %s33, %s34
    %p38 = pneg %p32
    %p39 = scmp.eq.s32.totalorder %s9, 1
    %p40 = por %p38, %p39
    %p41 = scmp.ne.s32.totalorder %s33, %s36
    %p42 = scmp.eq.s32.totalorder %s9, 0
    %p43 = por %p41, %p42
    %p44 = scmp.ne.s32.totalorder %s33, %s36
    %p45 = scmp.eq.s32.totalorder %s14, 1
    %p46 = por %p44, %p45
    %p47 = scmp.ne.s32.totalorder %s36, %s37
    %p48 = scmp.eq.s32.totalorder %s14, 0
    %p49 = por %p47, %p48
    %p50 = scmp.ne.s32.totalorder %s36, %s37
    %p51 = scmp.eq.s32.totalorder %s15, 1
    %p52 = por %p50, %p51
    %p54 = scmp.ne.s32.totalorder %s37, %s53
    %p55 = scmp.eq.s32.totalorder %s15, 0
    %p56 = por %p54, %p55
    %s57 = sadd.s32 %s16, %s17
    %s58 = sadd.s32 %s28, %s24
    %s59 = ssub.s32 %s57, %s58
    %p60 = scmp.eq.s32.totalorder %s59, 0
    %s62 = sadd.s32 %s61, 1
    %s63 = scalar_select %p60, %s61, %s62
    %p66 = pneg %p60
    %p67 = scmp.eq.s32.totalorder %s9, 1
    %p68 = por %p66, %p67
    %p69 = scmp.ne.s32.totalorder %s61, %s64
    %p70 = scmp.eq.s32.totalorder %s9, 0
    %p71 = por %p69, %p70
    %p72 = scmp.ne.s32.totalorder %s61, %s64
    %p73 = scmp.eq.s32.totalorder %s14, 1
    %p74 = por %p72, %p73
    %p75 = scmp.ne.s32.totalorder %s64, %s65
    %p76 = scmp.eq.s32.totalorder %s14, 0
    %p77 = por %p75, %p76
    %p78 = scmp.ne.s32.totalorder %s64, %s65
    %p79 = scmp.eq.s32.totalorder %s15, 1
    %p80 = por %p78, %p79
    %p82 = scmp.ne.s32.totalorder %s65, %s81
    %p83 = scmp.eq.s32.totalorder %s15, 0
    %p84 = por %p82, %p83
    %s85 = sadd.s32 %s16, %s17
    %s86 = sadd.s32 %s28, %s24
    %s87 = ssub.s32 %s85, %s86
    %p88 = scmp.eq.s32.totalorder %s87, 0
    %s90 = sadd.s32 %s89, 1
    %s91 = scalar_select %p88, %s89, %s90
    %p94 = pneg %p88
    %p95 = scmp.eq.s32.totalorder %s9, 1
    %p96 = por %p94, %p95
    %p97 = scmp.ne.s32.totalorder %s89, %s92
    %p98 = scmp.eq.s32.totalorder %s9, 0
    %p99 = por %p97, %p98
    %p100 = scmp.ne.s32.totalorder %s89, %s92
    %p101 = scmp.eq.s32.totalorder %s14, 1
    %p102 = por %p100, %p101
    %p103 = scmp.ne.s32.totalorder %s92, %s93
    %p104 = scmp.eq.s32.totalorder %s14, 0
    %p105 = por %p103, %p104
    %p106 = scmp.ne.s32.totalorder %s92, %s93
    %p107 = scmp.eq.s32.totalorder %s15, 1
    %p108 = por %p106, %p107
    %p110 = scmp.ne.s32.totalorder %s93, %s109
    %p111 = scmp.eq.s32.totalorder %s15, 0
    %p112 = por %p110, %p111
    %s113 = ssub.s32 %s16, %s28
    %p114 = scmp.eq.s32.totalorder %s113, 0
    %s116 = sadd.s32 %s115, 1
    %s117 = scalar_select %p114, %s115, %s116
    %p120 = pneg %p114
    %p121 = scmp.eq.s32.totalorder %s9, 1
    %p122 = por %p120, %p121
    %p123 = scmp.ne.s32.totalorder %s115, %s118
    %p124 = scmp.eq.s32.totalorder %s9, 0
    %p125 = por %p123, %p124
    %p126 = scmp.ne.s32.totalorder %s115, %s118
    %p127 = scmp.eq.s32.totalorder %s14, 1
    %p128 = por %p126, %p127
    %p129 = scmp.ne.s32.totalorder %s118, %s119
    %p130 = scmp.eq.s32.totalorder %s14, 0
    %p131 = por %p129, %p130
    %p132 = scmp.ne.s32.totalorder %s118, %s119
    %p133 = scmp.eq.s32.totalorder %s15, 1
    %p134 = por %p132, %p133
    %p136 = scmp.ne.s32.totalorder %s119, %s135
    %p137 = scmp.eq.s32.totalorder %s15, 0
    %p138 = por %p136, %p137
    %p139 = scmp.le.s32.totalorder 1, %s9
    %p140 = scmp.lt.s32.totalorder %s9, 3
    %p141 = pnand %p139, %p140
    %p142 = pneg %p141
    // Predicated region
    $region9: #{gan_loss.1} parent=5 // pred_check
      _
    $region10: #{gan_loss.1} parent=5 // pred_check_branch
      %144 = sbr.rel (%p141) target = $region12
    $region11: #{gan_loss.1} parent=5 // pred_region
      %s145 = ssub.s32 %s9, 1
    $region12: #{gan_loss.1} parent=5 // pred_fallthru
      _
    %p146 = scmp.lt.s32.totalorder %s9, 2
    // Predicated region
    $region13: #{gan_loss.1} parent=5 // pred_check
      %p147 = pneg %p146
    $region14: #{gan_loss.1} parent=5 // pred_check_branch
      %149 = sbr.rel (%p147) target = $region16
    $region15: #{gan_loss.1} parent=5 // pred_region
      // Predicated region
      $region17: #{gan_loss.1} parent=15 // pred_check
        %p150 = pneg %p43
      $region18: #{gan_loss.1} parent=15 // pred_check_branch
        %152 = sbr.rel (%p150) target = $region20
      $region19: #{gan_loss.1} parent=15 // pred_region
        %s153 = sadd.s32 %s16, %s17
        %s154 = smul.u32 2, %s153
        %p155 = scmp.lt.s32.totalorder %s154, 3
        %s156 = scalar_select %p155, %s154, 3
        %s157 = smul.addr %s156, 8
        %s158 = scalar_lea.vmem %s0, %s157
        %s159 = sadd.s32 %s16, %s17
        %s160 = smul.u32 2, %s159
      $region20: #{gan_loss.1} parent=15 // pred_fallthru
        _
      // Predicated region
      $region21: #{gan_loss.1} parent=15 // pred_check
        %p161 = pneg %p71
      $region22: #{gan_loss.1} parent=15 // pred_check_branch
        %163 = sbr.rel (%p161) target = $region24
      $region23: #{gan_loss.1} parent=15 // pred_region
        %s164 = sadd.s32 %s16, %s17
        %s165 = smul.u32 2, %s164
        %p166 = scmp.lt.s32.totalorder %s165, 3
        %s167 = scalar_select %p166, %s165, 3
        %s168 = smul.addr %s167, 8
        %s169 = scalar_lea.vmem %s1, %s168
        %s170 = sadd.s32 %s16, %s17
        %s171 = smul.u32 2, %s170
      $region24: #{gan_loss.1} parent=15 // pred_fallthru
        _
      // Predicated region
      $region25: #{gan_loss.1} parent=15 // pred_check
        %p172 = pneg %p99
      $region26: #{gan_loss.1} parent=15 // pred_check_branch
        %174 = sbr.rel (%p172) target = $region28
      $region27: #{gan_loss.1} parent=15 // pred_region
        %s175 = sadd.s32 %s16, %s17
        %s176 = smul.u32 2, %s175
        %p177 = scmp.lt.s32.totalorder %s176, 3
        %s178 = scalar_select %p177, %s176, 3
        %s179 = smul.addr %s178, 8
        %s180 = scalar_lea.vmem %s2, %s179
        %s181 = sadd.s32 %s16, %s17
        %s182 = smul.u32 2, %s181
      $region28: #{gan_loss.1} parent=15 // pred_fallthru
        _
    $region16: #{gan_loss.1} parent=5 // pred_fallthru
      _
    %p183 = scmp.le.s32.totalorder 1, %s9
    %p184 = scmp.lt.s32.totalorder %s9, 3
    %p185 = pnand %p183, %p184
    %p186 = pneg %p185
    // Predicated region
    $region29: #{gan_loss.1} parent=5 // pred_check
      _
    $region30: #{gan_loss.1} parent=5 // pred_check_branch
      %188 = sbr.rel (%p185) target = $region32
    $region31: #{gan_loss.1} parent=5 // pred_region
      %s189 = ssub.s32 %s9, 1
      %s190 = sadd.s32 %s18, %s19
      %s191 = smul.u32 2, %s190
      %p192 = scmp.lt.s32.totalorder %s191, 3
      %s193 = scalar_select %p192, %s191, 3
      %s194 = smul.addr %s193, 8
      %s195 = scalar_lea.vmem %s0, %s194
      %p196 = pneg %p49
      %p197 = pneg %p46
      %s198 = sadd.s32 %s18, %s19
      %s199 = smul.u32 2, %s198
      %p200 = scmp.lt.s32.totalorder %s199, 3
      %s201 = scalar_select %p200, %s199, 3
      %s202 = smul.addr %s201, 8
      %s203 = scalar_lea.vmem %s1, %s202
      %p204 = pneg %p77
      %p205 = pneg %p74
      %s206 = sadd.s32 %s18, %s19
      %s207 = smul.u32 2, %s206
      %p208 = scmp.lt.s32.totalorder %s207, 3
      %s209 = scalar_select %p208, %s207, 3
      %s210 = smul.addr %s209, 8
      %s211 = scalar_lea.vmem %s2, %s210
      %p212 = pneg %p105
      %p213 = pneg %p102
      %p214 = pneg %p131
      %p215 = pneg %p128
      %p216 = scmp.lt.s32.totalorder %s18, 1
      %s217 = scalar_select %p216, %s18, 1
      %s218 = smul.addr %s217, 8
      %s219 = scalar_lea.vmem %s3, %s218
      %s220 = sadd.s32 %s18, %s19
      %s221 = smul.u32 2, %s220
      %p222 = scmp.lt.s32.totalorder %s221, 3
      %s223 = scalar_select %p222, %s221, 3
      %s224 = smul.addr %s223, 8
      %s225 = scalar_lea.vmem %s0, %s224
      %s226 = sadd.s32 %s18, %s19
      %s227 = smul.u32 2, %s226
      %s228 = sadd.s32 %s18, %s19
      %s229 = smul.u32 2, %s228
      %p230 = scmp.lt.s32.totalorder %s229, 3
      %s231 = scalar_select %p230, %s229, 3
      %s232 = smul.addr %s231, 8
      %s233 = scalar_lea.vmem %s1, %s232
      %s234 = sadd.s32 %s18, %s19
      %s235 = smul.u32 2, %s234
      %s236 = sadd.s32 %s18, %s19
      %s237 = smul.u32 2, %s236
      %p238 = scmp.lt.s32.totalorder %s237, 3
      %s239 = scalar_select %p238, %s237, 3
      %s240 = smul.addr %s239, 8
      %s241 = scalar_lea.vmem %s2, %s240
      %s242 = sadd.s32 %s18, %s19
      %s243 = smul.u32 2, %s242
      %p244 = scmp.lt.s32.totalorder %s18, 1
      %s245 = scalar_select %p244, %s18, 1
      %s246 = smul.addr %s245, 8
      %s247 = scalar_lea.vmem %s3, %s246
      %p248 = scmp.eq.s32.totalorder %s19, 0
      // Predicated region
      $region33: #{gan_loss.1} parent=31 // pred_check
        %p249 = pneg %p248
      $region34: #{gan_loss.1} parent=31 // pred_check_branch
        %251 = sbr.rel (%p249) target = $region36
      $region35: #{gan_loss.1} parent=31 // pred_region
        %vm252 = vcmask 261120
        %253 = vst.msk [vmem:[%s247] sm:$0xff] %vm252, 0.0
      $region36: #{gan_loss.1} parent=31 // pred_fallthru
        _
      %v254 = vlaneseq
      %v255 = vand.u32 %v254, 127
      %v256 = vld [vmem:[%s233] sm:$0xff]
      %v257 = vld [vmem:[%s233 + $0x8] sm:$0xff]
      %258 = vset.pattern.permute.xlu0 0
      %259 = vperm.xlu0 %258, %v256
      %v260 = vpop.permute.xlu0 %259
      %261 = vset.pattern.permute.xlu0 0
      %262 = vperm.xlu0 %261, %v257
      %v263 = vpop.permute.xlu0 %262
      %vm264 = vcmp.eq.s32.totalorder %v255, %v260
      %vm265 = vcmp.eq.s32.totalorder %v255, %v263
      %v266 = vld [vmem:[%s225] sm:$0xff]
      %v267 = vld [vmem:[%s225 + $0x8] sm:$0xff]
      %v268 = vsel %vm264, %v266, 0.0
      %v269 = vsel %vm265, %v267, 0.0
      %v270 = vld [vmem:[%s241] sm:$0xff]
      %v271 = vld [vmem:[%s241 + $0x8] sm:$0xff]
      %273 = vset.pattern.permute.xlu0 0
      %274 = vperm.xlu0 %273, %v270
      %v275 = vpop.permute.xlu0 %274
      %278 = vset.pattern.permute.xlu0 0
      %279 = vperm.xlu0 %278, %v271
      %v280 = vpop.permute.xlu0 %279
      %v282 = vmul.f32 %v268, %v275
      %v283 = vmul.f32 %v269, %v280
      %v284 = vld [vmem:[%s247] sm:$0x1]
      %vm285 = vcmask 261120
      %v286 = vsel %vm285, %v282, 0.0
      %v287 = vsel %vm285, %v283, 0.0
      %v288 = vadd.f32 %v286, %v287
      %v289 = vrot.slane %v288, 4
      %v290 = vadd.f32 %v288, %v289
      %v291 = vrot.slane %v290, 2
      %v292 = vadd.f32 %v290, %v291
      %v293 = vrot.slane %v292, 1
      %v294 = vadd.f32 %v292, %v293
      %v295 = vadd.f32 %v284, %v294
      %vm296 = vcmask 253952
      %297 = vst.msk [vmem:[%s247] sm:$0x1] %vm296, %v295
      %p298 = scmp.lt.s32.totalorder %s18, 1
      %s299 = scalar_select %p298, %s18, 1
      %s300 = smul.addr %s299, 8
      %s301 = scalar_lea.vmem %s3, %s300
      // Predicated region
      $region37: #{gan_loss.1} parent=31 // pred_check
        %p302 = pneg %p128
      $region38: #{gan_loss.1} parent=31 // pred_check_branch
        %304 = sbr.rel (%p302) target = $region40
      $region39: #{gan_loss.1} parent=31 // pred_region
        _
      $region40: #{gan_loss.1} parent=31 // pred_fallthru
        _
    $region32: #{gan_loss.1} parent=5 // pred_fallthru
      _
    %p305 = scmp.le.s32.totalorder 2, %s9
    // Predicated region
    $region41: #{gan_loss.1} parent=5 // pred_check
      %p306 = pneg %p305
    $region42: #{gan_loss.1} parent=5 // pred_check_branch
      %308 = sbr.rel (%p306) target = $region44
    $region43: #{gan_loss.1} parent=5 // pred_region
      %s309 = ssub.s32 %s9, 2
      // Predicated region
      $region45: #{gan_loss.1} parent=43 // pred_check
        %p310 = pneg %p134
      $region46: #{gan_loss.1} parent=43 // pred_check_branch
        %312 = sbr.rel (%p310) target = $region48
      $region47: #{gan_loss.1} parent=43 // pred_region
        %p313 = scmp.lt.s32.totalorder %s20, 1
        %s314 = scalar_select %p313, %s20, 1
        %s315 = smul.addr %s314, 8
        %s316 = scalar_lea.vmem %s3, %s315
      $region48: #{gan_loss.1} parent=43 // pred_fallthru
        _
    $region44: #{gan_loss.1} parent=5 // pred_fallthru
      _
  $region6: #{gan_loss.1} parent=0 // loop_footer
    %s13 = sadd.s32 1, %s9
  $region7: #{gan_loss.1} parent=0 // loop_footer_branch
    %8 = sbr.rel target = $region3
  $region8: #{gan_loss.1} parent=0 // loop_exit
    _

</llo_original>
